<compile_context>
chip_gen: v7x
topology: tpu7x:2x2x1
jax: 0.10.0
libtpu: 0.0.40
codegen_flags: <defaults>
</compile_context>

<pallas_src>
import jax
import jax.numpy as jnp
from jax.experimental import pallas as pl
from jax.experimental.pallas import tpu as pltpu

EPS = 1e-5
LANE = 128


def _round_up(x, m):
    return ((x + m - 1) // m) * m


def _pad2(a, rows, cols):
    return jnp.pad(a, ((0, rows - a.shape[0]), (0, cols - a.shape[1])))


def _vmem_capacity_bytes():
    """Per-core VMEM capacity; conservative 64 MiB (v7x) if the query fails."""
    try:
        info = pltpu.get_tpu_info()
        cap = getattr(info, "vmem_capacity_bytes", None)
        if cap:
            return int(cap)
    except Exception:
        pass
    return 64 << 20


# ----------------------------------------------------------------------------- kernels

def head_kernel(x_ref, w0_ref, fb0_ref, s1_ref, t1_ref, w1_ref, fb1_ref,
                out_ref, feat_ref):
    # fc_0 with bn0 pre-folded; MXU matmul, f32 accumulation.
    h = jnp.dot(x_ref[...], w0_ref[...],
                preferred_element_type=jnp.float32) + fb0_ref[...]
    h = jnp.maximum(h, 0.0)                                   # ReLU

    # fc_1 with bn1 pre-folded (dropout p=0.5 is identity in eval mode).
    out = jnp.dot(h.astype(w1_ref.dtype), w1_ref[...],
                  preferred_element_type=jnp.float32) + fb1_ref[...]
    out_ref[...] = out.astype(out_ref.dtype)

    # Feature output f0 = bn1(ReLU(fc_0(bn0(x)))) -- affine runs on the VPU.
    feat_ref[...] = (h * s1_ref[...] + t1_ref[...]).astype(feat_ref.dtype)


def head_kernel_ktiled(x_ref, w0_ref, fb0_ref, s1_ref, t1_ref, w1_ref, fb1_ref,
                       out_ref, feat_ref, acc_ref):
    # Reduction (input_dim) split across grid axis 1; f32 accumulator scratch.
    k = pl.program_id(1)

    @pl.when(k == 0)
    def _():
        acc_ref[...] = jnp.zeros_like(acc_ref)

    acc_ref[...] += jnp.dot(x_ref[...], w0_ref[...],
                            preferred_element_type=jnp.float32)

    @pl.when(k == pl.num_programs(1) - 1)
    def _():
        h = jnp.maximum(acc_ref[...] + fb0_ref[...], 0.0)
        out = jnp.dot(h.astype(w1_ref.dtype), w1_ref[...],
                      preferred_element_type=jnp.float32) + fb1_ref[...]
        out_ref[...] = out.astype(out_ref.dtype)
        feat_ref[...] = (h * s1_ref[...] + t1_ref[...]).astype(feat_ref.dtype)


# ----------------------------------------------------------------------------- host-side prep

def prepare_params(params, matmul_dtype=jnp.bfloat16):
    """Fold eval-mode BatchNorms into the Linears and lane-pad everything to 128."""
    g0, b0, m0, v0 = params["g0"], params["b0"], params["m0"], params["v0"]
    g1, b1, m1, v1 = params["g1"], params["b1"], params["m1"], params["v1"]
    w0, fb0 = params["w0"], params["fb0"]          # (D, H), (1, H)
    w1, fb1 = params["w1"], params["fb1"]          # (H, C), (1, C)

    d, h = w0.shape
    c = w1.shape[1]
    dp, hp, cp = _round_up(d, LANE), _round_up(h, LANE), _round_up(c, LANE)

    # bn0(x) @ w0 + fb0  ==  x @ (s0[:,None]*w0) + (t0 @ w0 + fb0)
    s0 = g0 * jax.lax.rsqrt(v0 + EPS)
    t0 = b0 - m0 * s0
    w0f = (s0.reshape(-1, 1) * w0).astype(jnp.float32)
    fb0f = (t0 @ w0 + fb0).astype(jnp.float32)

    # bn1 (eval): f0 = h * s1 + t1 ; fold into fc_1:
    #   f0 @ w1 + fb1 == h @ (s1[:,None]*w1) + (t1 @ w1 + fb1)
    s1 = (g1 * jax.lax.rsqrt(v1 + EPS)).astype(jnp.float32)
    t1 = (b1 - m1 * s1).astype(jnp.float32)
    w1f = (s1.reshape(-1, 1) * w1).astype(jnp.float32)
    fb1f = (t1 @ w1 + fb1).astype(jnp.float32)

    return {
        "w0": _pad2(w0f, dp, hp).astype(matmul_dtype),
        "fb0": _pad2(fb0f, 1, hp),
        "s1": _pad2(s1, 1, hp),
        "t1": _pad2(t1, 1, hp),
        "w1f": _pad2(w1f, hp, cp).astype(matmul_dtype),
        "fb1f": _pad2(fb1f, 1, cp),
        "dims": (d, h, c, dp, hp, cp),
        "matmul_dtype": matmul_dtype,
    }


# ----------------------------------------------------------------------------- forward

def head_forward(x, prep, tile_n=512, k_tile=512, force_k_tiling=False):
    d, h, c, dp, hp, cp = prep["dims"]
    mdt = prep["matmul_dtype"]
    itemsize = jnp.dtype(mdt).itemsize
    n = x.shape[0]

    vmem_cap = _vmem_capacity_bytes()
    budget = vmem_cap * 3 // 4                 # headroom for Mosaic internal scratch

    # Batch tile: multiple of 16 (bf16 sublane packing); >=2 grid steps along the
    # batch when the batch allows it so both v7x TensorCores get work.
    tile_n = max(16, min(tile_n, _round_up(n, 16)))
    if n > 16:
        tile_n = min(tile_n, max(16, _round_up((n + 1) // 2, 16)))

    # VMEM planning conservatively assumes double-buffered residents (wbuf=2);
    # the kernel tries to single-buffer them, which only adds headroom.
    def plan_a_bytes(t, wbuf=2):
        resident = wbuf * ((dp * hp + hp * cp) * itemsize + (3 * hp + cp) * 4)
        streamed = 2 * t * (dp * itemsize + 2 * hp + 4 * cp)   # x + feat(bf16) + out(f32)
        return resident + streamed

    def plan_b_bytes(t, tk, wbuf=2):
        resident = wbuf * (hp * cp * itemsize + (3 * hp + cp) * 4) + t * hp * 4
        streamed = 2 * (t * tk + tk * hp) * itemsize + 2 * t * (2 * hp + 4 * cp)
        return resident + streamed

    def shrink(t, fits):
        while t > 16 and not fits(t):
            t = max(16, _round_up(t // 2, 16))
        return t

    t_a = shrink(tile_n, lambda t: plan_a_bytes(t) <= budget)
    use_k = force_k_tiling or (t_a < min(128, tile_n) and dp > 256)

    if use_k:
        tk = max(128, (min(k_tile, dp) // 128) * 128)
        while dp % tk:
            tk -= 128
        tile_n = shrink(tile_n, lambda t: plan_b_bytes(t, tk) <= budget)
        need = plan_b_bytes(tile_n, tk)
    else:
        tk = dp
        tile_n = t_a
        need = plan_a_bytes(tile_n)

    n_pad = _round_up(n, tile_n)
    x_pad = _pad2(x.astype(jnp.float32), n_pad, dp).astype(mdt)
    nb = n_pad // tile_n
    nk = dp // tk

    vmem_limit = int(min(max(need + (8 << 20), 16 << 20), vmem_cap))
    flops = int(2 * n_pad * (dp * hp + hp * cp))
    weight_bytes = ((nb * dp * hp if use_k else dp * hp) + hp * cp) * itemsize
    bytes_accessed = int(n_pad * dp * itemsize + weight_bytes
                         + n_pad * (2 * hp + 4 * cp))

    out_shapes = (jax.ShapeDtypeStruct((n_pad, cp), jnp.float32),
                  jax.ShapeDtypeStruct((n_pad, hp), jnp.bfloat16))

    def run(single_buffer_residents):
        if use_k:
            const_idx = lambda i, k: (0, 0)
        else:
            const_idx = lambda i: (0, 0)

        def resident_spec(shape):
            # Resident operands never change across the grid: 1 buffer is enough.
            if single_buffer_residents:
                return pl.BlockSpec(shape, const_idx, pipeline_mode=pl.Buffered(1))
            return pl.BlockSpec(shape, const_idx)

        if use_k:
            grid = (nb, nk)
            in_specs = [
                pl.BlockSpec((tile_n, tk), lambda i, k: (i, k)),   # x (streamed)
                pl.BlockSpec((tk, hp), lambda i, k: (k, 0)),       # w0 (streamed over K)
                resident_spec((1, hp)),                            # fb0
                resident_spec((1, hp)),                            # s1
                resident_spec((1, hp)),                            # t1
                resident_spec((hp, cp)),                           # w1 (bn1-folded)
                resident_spec((1, cp)),                            # fb1 (bn1-folded)
            ]
            out_specs = (pl.BlockSpec((tile_n, cp), lambda i, k: (i, 0)),
                         pl.BlockSpec((tile_n, hp), lambda i, k: (i, 0)))
            scratch = [pltpu.VMEM((tile_n, hp), jnp.float32)]
            kernel = head_kernel_ktiled
            dims = ("parallel", "arbitrary")
        else:
            grid = (nb,)
            in_specs = [
                pl.BlockSpec((tile_n, dp), lambda i: (i, 0)),      # x (streamed)
                resident_spec((dp, hp)),                           # w0 (resident)
                resident_spec((1, hp)),                            # fb0
                resident_spec((1, hp)),                            # s1
                resident_spec((1, hp)),                            # t1
                resident_spec((hp, cp)),                           # w1 (bn1-folded)
                resident_spec((1, cp)),                            # fb1 (bn1-folded)
            ]
            out_specs = (pl.BlockSpec((tile_n, cp), lambda i: (i, 0)),
                         pl.BlockSpec((tile_n, hp), lambda i: (i, 0)))
            scratch = []
            kernel = head_kernel
            dims = ("parallel",)

        return pl.pallas_call(
            kernel,
            out_shape=out_shapes,
            grid=grid,
            in_specs=in_specs,
            out_specs=out_specs,
            scratch_shapes=scratch,
            compiler_params=pltpu.CompilerParams(
                dimension_semantics=dims,
                vmem_limit_bytes=vmem_limit,
            ),
            cost_estimate=pl.CostEstimate(
                flops=flops, transcendentals=0, bytes_accessed=bytes_accessed),
        )(x_pad, prep["w0"], prep["fb0"], prep["s1"], prep["t1"],
          prep["w1f"], prep["fb1f"])

    try:
        out_p, feat_p = run(True)
    except Exception:
        # Installed JAX rejected single-buffered residents -> default buffering.
        out_p, feat_p = run(False)

    return {"output": out_p[:n, :c], "feature": feat_p[:n, :h]}


# ----------------------------------------------------------------------------- references / init

def init_params(key, input_dim, hidden_dim, n_class):
    ks = jax.random.split(key, 12)
    p = {}
    # bn0
    p["g0"] = (1.0 + 0.1 * jax.random.normal(ks[0], (1, input_dim))).astype(jnp.float32)
    p["b0"] = (0.1 * jax.random.normal(ks[1], (1, input_dim))).astype(jnp.float32)
    p["m0"] = (0.05 * jax.random.normal(ks[2], (1, input_dim))).astype(jnp.float32)
    p["v0"] = (1.0 + 0.1 * jnp.abs(jax.random.normal(ks[3], (1, input_dim)))).astype(jnp.float32)
    # fc_0 (stored transposed: (input_dim, hidden_dim))
    p["w0"] = (jax.random.normal(ks[4], (input_dim, hidden_dim)) / jnp.sqrt(input_dim)).astype(jnp.float32)
    p["fb0"] = (0.01 * jax.random.normal(ks[5], (1, hidden_dim))).astype(jnp.float32)
    # bn1
    p["g1"] = (1.0 + 0.1 * jax.random.normal(ks[6], (1, hidden_dim))).astype(jnp.float32)
    p["b1"] = (0.1 * jax.random.normal(ks[7], (1, hidden_dim))).astype(jnp.float32)
    p["m1"] = (0.05 * jax.random.normal(ks[8], (1, hidden_dim))).astype(jnp.float32)
    p["v1"] = (1.0 + 0.1 * jnp.abs(jax.random.normal(ks[9], (1, hidden_dim)))).astype(jnp.float32)
    # fc_1 (stored transposed: (hidden_dim, n_class))
    p["w1"] = (jax.random.normal(ks[10], (hidden_dim, n_class)) / jnp.sqrt(hidden_dim)).astype(jnp.float32)
    p["fb1"] = (0.01 * jax.random.normal(ks[11], (1, n_class))).astype(jnp.float32)
    return p


def head_reference(x, p):
    """Pure-JAX f32 reference of the original (unfused) eval-mode module."""
    xb = (x - p["m0"]) / jnp.sqrt(p["v0"] + EPS) * p["g0"] + p["b0"]
    h = jnp.maximum(xb @ p["w0"] + p["fb0"], 0.0)
    f0 = (h - p["m1"]) / jnp.sqrt(p["v1"] + EPS) * p["g1"] + p["b1"]
    out = f0 @ p["w1"] + p["fb1"]
    return {"output": out, "feature": f0}


def head_reference_prepared(x, prep):
    """Reference following the exact folded / padded / bf16 math of the kernel."""
    d, h, c, dp, hp, cp = prep["dims"]
    mdt = prep["matmul_dtype"]
    xp = _pad2(x.astype(jnp.float32), x.shape[0], dp).astype(mdt)
    hh = jnp.maximum(
        jnp.dot(xp, prep["w0"], preferred_element_type=jnp.float32) + prep["fb0"], 0.0)
    f0 = (hh * prep["s1"] + prep["t1"]).astype(jnp.bfloat16)
    out = jnp.dot(hh.astype(mdt), prep["w1f"],
                  preferred_element_type=jnp.float32) + prep["fb1f"]
    return {"output": out[:, :c], "feature": f0[:, :h]}


def _check(res, x, params, prep, n, c, h):
    assert res["output"].shape == (n, c)
    assert res["feature"].shape == (n, h)

    # Tight check vs a reference using the same folded / padded / bf16 math.
    ref_p = head_reference_prepared(x, prep)
    assert jnp.allclose(res["output"], ref_p["output"], atol=1e-2, rtol=1e-2)
    assert jnp.allclose(res["feature"].astype(jnp.float32),
                        ref_p["feature"].astype(jnp.float32), atol=1e-2, rtol=1e-2)

    # Loose check vs original unfused f32 semantics (bounds bf16 + fold error).
    ref = head_reference(x, params)
    assert float(jnp.max(jnp.abs(res["output"] - ref["output"]))) < 0.1
    assert float(jnp.max(jnp.abs(res["feature"].astype(jnp.float32)
                                 - ref["feature"]))) < 0.05


# ----------------------------------------------------------------------------- demo

if __name__ == "__main__":
    keys = jax.random.split(jax.random.PRNGKey(0), 4)

    # Case 1: default resident-weight path (small Head).
    batch, input_dim, hidden_dim, n_class = 8, 32, 32, 8
    x = jax.random.normal(keys[0], (batch, input_dim), dtype=jnp.float32)
    params = init_params(keys[1], input_dim, hidden_dim, n_class)
    prep = prepare_params(params, matmul_dtype=jnp.bfloat16)
    res = head_forward(x, prep)
    jax.block_until_ready(res)
    _check(res, x, params, prep, batch, n_class, hidden_dim)

    # Case 2: force the K-tiled (reduction-split) fallback path so it is
    # exercised and verified on-device too (2 batch tiles x 2 K tiles).
    batch2, input_dim2, hidden_dim2, n_class2 = 40, 256, 64, 8
    x2 = jax.random.normal(keys[2], (batch2, input_dim2), dtype=jnp.float32)
    params2 = init_params(keys[3], input_dim2, hidden_dim2, n_class2)
    prep2 = prepare_params(params2, matmul_dtype=jnp.bfloat16)
    res2 = head_forward(x2, prep2, k_tile=128, force_k_tiling=True)
    jax.block_until_ready(res2)
    _check(res2, x2, params2, prep2, batch2, n_class2, hidden_dim2)

    print("KERNEL_OK")
</pallas_src>

<mosaic_0001>
module attributes {stable_mosaic.version = 11 : i64} {
  func.func @head_kernel(%arg0: i32, %arg1: memref<16x128xbf16, #tpu.memory_space<vmem>>, %arg2: memref<128x128xbf16, #tpu.memory_space<vmem>>, %arg3: memref<1x128xf32, #tpu.memory_space<vmem>>, %arg4: memref<1x128xf32, #tpu.memory_space<vmem>>, %arg5: memref<1x128xf32, #tpu.memory_space<vmem>>, %arg6: memref<128x128xbf16, #tpu.memory_space<vmem>>, %arg7: memref<1x128xf32, #tpu.memory_space<vmem>>, %arg8: memref<16x128xf32, #tpu.memory_space<vmem>>, %arg9: memref<16x128xbf16, #tpu.memory_space<vmem>>) attributes {dimension_semantics = [#tpu.dimension_semantics<parallel>], iteration_bounds = array<i64: 1>, scalar_prefetch = 0 : i64, scratch_operands = 0 : i64, tpu.core_type = #tpu.core_type<tc>, window_params = [{transform_indices = @transform_0, window_bounds = array<i64: 16, 128>}, {pipeline_mode = #tpu.pipeline_mode<synchronous>, transform_indices = @transform_1, window_bounds = array<i64: 128, 128>}, {pipeline_mode = #tpu.pipeline_mode<synchronous>, transform_indices = @transform_2, window_bounds = array<i64: 1, 128>}, {pipeline_mode = #tpu.pipeline_mode<synchronous>, transform_indices = @transform_3, window_bounds = array<i64: 1, 128>}, {pipeline_mode = #tpu.pipeline_mode<synchronous>, transform_indices = @transform_4, window_bounds = array<i64: 1, 128>}, {pipeline_mode = #tpu.pipeline_mode<synchronous>, transform_indices = @transform_5, window_bounds = array<i64: 128, 128>}, {pipeline_mode = #tpu.pipeline_mode<synchronous>, transform_indices = @transform_6, window_bounds = array<i64: 1, 128>}, {transform_indices = @transform_7, window_bounds = array<i64: 16, 128>}, {transform_indices = @transform_8, window_bounds = array<i64: 16, 128>}]} {
    %c0 = arith.constant 0 : index
    %c0_0 = arith.constant 0 : index
    %0 = vector.load %arg1[%c0, %c0_0] : memref<16x128xbf16, #tpu.memory_space<vmem>>, vector<16x128xbf16>
    %c0_1 = arith.constant 0 : index
    %c0_2 = arith.constant 0 : index
    %1 = vector.load %arg2[%c0_1, %c0_2] : memref<128x128xbf16, #tpu.memory_space<vmem>>, vector<128x128xbf16>
    %cst = arith.constant dense<0.000000e+00> : vector<16x128xf32>
    %2 = tpu.matmul %0, %1, %cst {dimension_numbers = #tpu.dot_dimension_numbers<[1], [0], [0], [1], [0, 0, 1, 1], [], []>} : vector<16x128xbf16>, vector<128x128xbf16>, vector<16x128xf32> -> vector<16x128xf32>
    %c0_3 = arith.constant 0 : index
    %c0_4 = arith.constant 0 : index
    %3 = vector.load %arg3[%c0_3, %c0_4] : memref<1x128xf32, #tpu.memory_space<vmem>>, vector<1x128xf32>
    %4 = vector.broadcast %3 : vector<1x128xf32> to vector<16x128xf32>
    %5 = arith.addf %2, %4 : vector<16x128xf32>
    %cst_5 = arith.constant 0.000000e+00 : f32
    %6 = vector.broadcast %cst_5 : f32 to vector<16x128xf32>
    %7 = arith.maximumf %5, %6 : vector<16x128xf32>
    %8 = arith.truncf %7 : vector<16x128xf32> to vector<16x128xbf16>
    %c0_6 = arith.constant 0 : index
    %c0_7 = arith.constant 0 : index
    %9 = vector.load %arg6[%c0_6, %c0_7] : memref<128x128xbf16, #tpu.memory_space<vmem>>, vector<128x128xbf16>
    %cst_8 = arith.constant dense<0.000000e+00> : vector<16x128xf32>
    %10 = tpu.matmul %8, %9, %cst_8 {dimension_numbers = #tpu.dot_dimension_numbers<[1], [0], [0], [1], [0, 0, 1, 1], [], []>} : vector<16x128xbf16>, vector<128x128xbf16>, vector<16x128xf32> -> vector<16x128xf32>
    %c0_9 = arith.constant 0 : index
    %c0_10 = arith.constant 0 : index
    %11 = vector.load %arg7[%c0_9, %c0_10] : memref<1x128xf32, #tpu.memory_space<vmem>>, vector<1x128xf32>
    %12 = vector.broadcast %11 : vector<1x128xf32> to vector<16x128xf32>
    %13 = arith.addf %10, %12 : vector<16x128xf32>
    %c0_11 = arith.constant 0 : index
    %c0_12 = arith.constant 0 : index
    %14 = vector.load %arg8[%c0_11, %c0_12] : memref<16x128xf32, #tpu.memory_space<vmem>>, vector<16x128xf32>
    tpu.vector_store %arg8[%c0_11, %c0_12], %13 {strides = array<i32>} : memref<16x128xf32, #tpu.memory_space<vmem>>, vector<16x128xf32>,
    %c0_13 = arith.constant 0 : index
    %c0_14 = arith.constant 0 : index
    %15 = vector.load %arg4[%c0_13, %c0_14] : memref<1x128xf32, #tpu.memory_space<vmem>>, vector<1x128xf32>
    %16 = vector.broadcast %15 : vector<1x128xf32> to vector<16x128xf32>
    %17 = arith.mulf %7, %16 : vector<16x128xf32>
    %c0_15 = arith.constant 0 : index
    %c0_16 = arith.constant 0 : index
    %18 = vector.load %arg5[%c0_15, %c0_16] : memref<1x128xf32, #tpu.memory_space<vmem>>, vector<1x128xf32>
    %19 = vector.broadcast %18 : vector<1x128xf32> to vector<16x128xf32>
    %20 = arith.addf %17, %19 : vector<16x128xf32>
    %21 = arith.truncf %20 : vector<16x128xf32> to vector<16x128xbf16>
    %c0_17 = arith.constant 0 : index
    %c0_18 = arith.constant 0 : index
    %22 = vector.load %arg9[%c0_17, %c0_18] : memref<16x128xbf16, #tpu.memory_space<vmem>>, vector<16x128xbf16>
    tpu.vector_store %arg9[%c0_17, %c0_18], %21 {strides = array<i32>} : memref<16x128xbf16, #tpu.memory_space<vmem>>, vector<16x128xbf16>,
    return
  }
  func.func @transform_0(%arg0: i32) -> (i32, i32) {
    %c0_i32 = arith.constant 0 : i32
    %c0_i32_0 = arith.constant 0 : i32
    return %arg0, %c0_i32 : i32, i32
  }
  func.func @transform_1(%arg0: i32) -> (i32, i32) {
    %c0_i32 = arith.constant 0 : i32
    %c0_i32_0 = arith.constant 0 : i32
    %c0_i32_1 = arith.constant 0 : i32
    return %c0_i32, %c0_i32_0 : i32, i32
  }
  func.func @transform_2(%arg0: i32) -> (i32, i32) {
    %c0_i32 = arith.constant 0 : i32
    %c0_i32_0 = arith.constant 0 : i32
    %c0_i32_1 = arith.constant 0 : i32
    return %c0_i32, %c0_i32_0 : i32, i32
  }
  func.func @transform_3(%arg0: i32) -> (i32, i32) {
    %c0_i32 = arith.constant 0 : i32
    %c0_i32_0 = arith.constant 0 : i32
    %c0_i32_1 = arith.constant 0 : i32
    return %c0_i32, %c0_i32_0 : i32, i32
  }
  func.func @transform_4(%arg0: i32) -> (i32, i32) {
    %c0_i32 = arith.constant 0 : i32
    %c0_i32_0 = arith.constant 0 : i32
    %c0_i32_1 = arith.constant 0 : i32
    return %c0_i32, %c0_i32_0 : i32, i32
  }
  func.func @transform_5(%arg0: i32) -> (i32, i32) {
    %c0_i32 = arith.constant 0 : i32
    %c0_i32_0 = arith.constant 0 : i32
    %c0_i32_1 = arith.constant 0 : i32
    return %c0_i32, %c0_i32_0 : i32, i32
  }
  func.func @transform_6(%arg0: i32) -> (i32, i32) {
    %c0_i32 = arith.constant 0 : i32
    %c0_i32_0 = arith.constant 0 : i32
    %c0_i32_1 = arith.constant 0 : i32
    return %c0_i32, %c0_i32_0 : i32, i32
  }
  func.func @transform_7(%arg0: i32) -> (i32, i32) {
    %c0_i32 = arith.constant 0 : i32
    %c0_i32_0 = arith.constant 0 : i32
    return %arg0, %c0_i32 : i32, i32
  }
  func.func @transform_8(%arg0: i32) -> (i32, i32) {
    %c0_i32 = arith.constant 0 : i32
    %c0_i32_0 = arith.constant 0 : i32
    return %arg0, %c0_i32 : i32, i32
  }
}

module attributes {stable_mosaic.version = 11 : i64} {
  func.func @head_kernel(%arg0: i32, %arg1: memref<16x128xbf16, #tpu.memory_space<vmem>>, %arg2: memref<128x128xbf16, #tpu.memory_space<vmem>>, %arg3: memref<1x128xf32, #tpu.memory_space<vmem>>, %arg4: memref<1x128xf32, #tpu.memory_space<vmem>>, %arg5: memref<1x128xf32, #tpu.memory_space<vmem>>, %arg6: memref<128x128xbf16, #tpu.memory_space<vmem>>, %arg7: memref<1x128xf32, #tpu.memory_space<vmem>>, %arg8: memref<16x128xf32, #tpu.memory_space<vmem>>, %arg9: memref<16x128xbf16, #tpu.memory_space<vmem>>) attributes {dimension_semantics = [#tpu.dimension_semantics<parallel>], iteration_bounds = array<i64: 1>, scalar_prefetch = 0 : i64, scratch_operands = 0 : i64, tpu.core_type = #tpu.core_type<tc>, window_params = [{transform_indices = @transform_0, window_bounds = array<i64: 16, 128>}, {pipeline_mode = #tpu.pipeline_mode<synchronous>, transform_indices = @transform_1, window_bounds = array<i64: 128, 128>}, {pipeline_mode = #tpu.pipeline_mode<synchronous>, transform_indices = @transform_2, window_bounds = array<i64: 1, 128>}, {pipeline_mode = #tpu.pipeline_mode<synchronous>, transform_indices = @transform_3, window_bounds = array<i64: 1, 128>}, {pipeline_mode = #tpu.pipeline_mode<synchronous>, transform_indices = @transform_4, window_bounds = array<i64: 1, 128>}, {pipeline_mode = #tpu.pipeline_mode<synchronous>, transform_indices = @transform_5, window_bounds = array<i64: 128, 128>}, {pipeline_mode = #tpu.pipeline_mode<synchronous>, transform_indices = @transform_6, window_bounds = array<i64: 1, 128>}, {transform_indices = @transform_7, window_bounds = array<i64: 16, 128>}, {transform_indices = @transform_8, window_bounds = array<i64: 16, 128>}]} {
    %c0 = arith.constant 0 : index
    %c0_0 = arith.constant 0 : index
    %0 = vector.load %arg1[%c0, %c0_0] : memref<16x128xbf16, #tpu.memory_space<vmem>>, vector<16x128xbf16>
    %c0_1 = arith.constant 0 : index
    %c0_2 = arith.constant 0 : index
    %1 = vector.load %arg2[%c0_1, %c0_2] : memref<128x128xbf16, #tpu.memory_space<vmem>>, vector<128x128xbf16>
    %cst = arith.constant dense<0.000000e+00> : vector<16x128xf32>
    %2 = tpu.matmul %0, %1, %cst {dimension_numbers = #tpu.dot_dimension_numbers<[1], [0], [0], [1], [0, 0, 1, 1], [], []>} : vector<16x128xbf16>, vector<128x128xbf16>, vector<16x128xf32> -> vector<16x128xf32>
    %c0_3 = arith.constant 0 : index
    %c0_4 = arith.constant 0 : index
    %3 = vector.load %arg3[%c0_3, %c0_4] : memref<1x128xf32, #tpu.memory_space<vmem>>, vector<1x128xf32>
    %4 = vector.broadcast %3 : vector<1x128xf32> to vector<16x128xf32>
    %5 = arith.addf %2, %4 : vector<16x128xf32>
    %cst_5 = arith.constant 0.000000e+00 : f32
    %6 = vector.broadcast %cst_5 : f32 to vector<16x128xf32>
    %7 = arith.maximumf %5, %6 : vector<16x128xf32>
    %8 = arith.truncf %7 : vector<16x128xf32> to vector<16x128xbf16>
    %c0_6 = arith.constant 0 : index
    %c0_7 = arith.constant 0 : index
    %9 = vector.load %arg6[%c0_6, %c0_7] : memref<128x128xbf16, #tpu.memory_space<vmem>>, vector<128x128xbf16>
    %cst_8 = arith.constant dense<0.000000e+00> : vector<16x128xf32>
    %10 = tpu.matmul %8, %9, %cst_8 {dimension_numbers = #tpu.dot_dimension_numbers<[1], [0], [0], [1], [0, 0, 1, 1], [], []>} : vector<16x128xbf16>, vector<128x128xbf16>, vector<16x128xf32> -> vector<16x128xf32>
    %c0_9 = arith.constant 0 : index
    %c0_10 = arith.constant 0 : index
    %11 = vector.load %arg7[%c0_9, %c0_10] : memref<1x128xf32, #tpu.memory_space<vmem>>, vector<1x128xf32>
    %12 = vector.broadcast %11 : vector<1x128xf32> to vector<16x128xf32>
    %13 = arith.addf %10, %12 : vector<16x128xf32>
    %c0_11 = arith.constant 0 : index
    %c0_12 = arith.constant 0 : index
    %14 = vector.load %arg8[%c0_11, %c0_12] : memref<16x128xf32, #tpu.memory_space<vmem>>, vector<16x128xf32>
    tpu.vector_store %arg8[%c0_11, %c0_12], %13 {strides = array<i32>} : memref<16x128xf32, #tpu.memory_space<vmem>>, vector<16x128xf32>,
    %c0_13 = arith.constant 0 : index
    %c0_14 = arith.constant 0 : index
    %15 = vector.load %arg4[%c0_13, %c0_14] : memref<1x128xf32, #tpu.memory_space<vmem>>, vector<1x128xf32>
    %16 = vector.broadcast %15 : vector<1x128xf32> to vector<16x128xf32>
    %17 = arith.mulf %7, %16 : vector<16x128xf32>
    %c0_15 = arith.constant 0 : index
    %c0_16 = arith.constant 0 : index
    %18 = vector.load %arg5[%c0_15, %c0_16] : memref<1x128xf32, #tpu.memory_space<vmem>>, vector<1x128xf32>
    %19 = vector.broadcast %18 : vector<1x128xf32> to vector<16x128xf32>
    %20 = arith.addf %17, %19 : vector<16x128xf32>
    %21 = arith.truncf %20 : vector<16x128xf32> to vector<16x128xbf16>
    %c0_17 = arith.constant 0 : index
    %c0_18 = arith.constant 0 : index
    %22 = vector.load %arg9[%c0_17, %c0_18] : memref<16x128xbf16, #tpu.memory_space<vmem>>, vector<16x128xbf16>
    tpu.vector_store %arg9[%c0_17, %c0_18], %21 {strides = array<i32>} : memref<16x128xbf16, #tpu.memory_space<vmem>>, vector<16x128xbf16>,
    return
  }
  func.func @transform_0(%arg0: i32) -> (i32, i32) {
    %c0_i32 = arith.constant 0 : i32
    %c0_i32_0 = arith.constant 0 : i32
    return %arg0, %c0_i32 : i32, i32
  }
  func.func @transform_1(%arg0: i32) -> (i32, i32) {
    %c0_i32 = arith.constant 0 : i32
    %c0_i32_0 = arith.constant 0 : i32
    %c0_i32_1 = arith.constant 0 : i32
    return %c0_i32, %c0_i32_0 : i32, i32
  }
  func.func @transform_2(%arg0: i32) -> (i32, i32) {
    %c0_i32 = arith.constant 0 : i32
    %c0_i32_0 = arith.constant 0 : i32
    %c0_i32_1 = arith.constant 0 : i32
    return %c0_i32, %c0_i32_0 : i32, i32
  }
  func.func @transform_3(%arg0: i32) -> (i32, i32) {
    %c0_i32 = arith.constant 0 : i32
    %c0_i32_0 = arith.constant 0 : i32
    %c0_i32_1 = arith.constant 0 : i32
    return %c0_i32, %c0_i32_0 : i32, i32
  }
  func.func @transform_4(%arg0: i32) -> (i32, i32) {
    %c0_i32 = arith.constant 0 : i32
    %c0_i32_0 = arith.constant 0 : i32
    %c0_i32_1 = arith.constant 0 : i32
    return %c0_i32, %c0_i32_0 : i32, i32
  }
  func.func @transform_5(%arg0: i32) -> (i32, i32) {
    %c0_i32 = arith.constant 0 : i32
    %c0_i32_0 = arith.constant 0 : i32
    %c0_i32_1 = arith.constant 0 : i32
    return %c0_i32, %c0_i32_0 : i32, i32
  }
  func.func @transform_6(%arg0: i32) -> (i32, i32) {
    %c0_i32 = arith.constant 0 : i32
    %c0_i32_0 = arith.constant 0 : i32
    %c0_i32_1 = arith.constant 0 : i32
    return %c0_i32, %c0_i32_0 : i32, i32
  }
  func.func @transform_7(%arg0: i32) -> (i32, i32) {
    %c0_i32 = arith.constant 0 : i32
    %c0_i32_0 = arith.constant 0 : i32
    return %arg0, %c0_i32 : i32, i32
  }
  func.func @transform_8(%arg0: i32) -> (i32, i32) {
    %c0_i32 = arith.constant 0 : i32
    %c0_i32_0 = arith.constant 0 : i32
    return %arg0, %c0_i32 : i32, i32
  }
}

</mosaic_0001>

<llo_original>
// kernel: tpu_custom_call.1
$region0: #{tpu_custom_call.1}
  #allocation0 [shape = 'u32[]', space=smem, size = 0x4, offset = 0x4, fixed_abs, tag = 'smem constant byte address 0x4 - core index']
  #allocation1 [shape = 'u32[144,128]{1,0:T(1,128)}', space=vmem, size = 0x12000, scoped, tag = 'internal scratch']
  %s0 = inlined_call_operand.hbm [shape: bf16[16,128], index: 0, kind: input, shape index: {}]
  %s1 = inlined_call_operand.hbm [shape: bf16[128,128], index: 1, kind: input, shape index: {}]
  %s2 = inlined_call_operand.vmem [shape: f32[1,128], index: 2, kind: input, shape index: {}]
  %s3 = inlined_call_operand.vmem [shape: f32[1,128], index: 3, kind: input, shape index: {}]
  %s4 = inlined_call_operand.vmem [shape: f32[1,128], index: 4, kind: input, shape index: {}]
  %s5 = inlined_call_operand.hbm [shape: bf16[128,128], index: 5, kind: input, shape index: {}]
  %s6 = inlined_call_operand.vmem [shape: f32[1,128], index: 6, kind: input, shape index: {}]
  %s7 = inlined_call_operand.hbm [shape: f32[16,128], index: 7, kind: output, shape index: {0}]
  %s8 = inlined_call_operand.hbm [shape: bf16[16,128], index: 8, kind: output, shape index: {1}]
  %9 = xla_tuple %s7, %s8
  %s10 = sld [smem:[#allocation0]]
  $region58: #{tpu_custom_call.1} parent=0
    _
  %s12 = ssub.s32 1, %s10
  %s13 = scalar_select 0, %s12, %s10
  $region1: #{tpu_custom_call.1} parent=0
    #allocation2 [shape = 'u8[4096]{0}', space=vmem, size = 0x1000, scoped, tag = 'input window, operand 0, single buffered']
    #allocation3 [shape = 's32[1]{0}', space=sflag, size = 0x4, scoped, tag = 'scoped memory for tpu_custom_call.1']
    #allocation4 [shape = 's32[1]{0}', space=sflag, size = 0x4, scoped, tag = 'scoped memory for tpu_custom_call.1']
    #allocation5 [shape = 'u8[32768]{0}', space=vmem, size = 0x8000, scoped, tag = 'input window, operand 1, single buffered']
    #allocation6 [shape = 's32[1]{0}', space=sflag, size = 0x4, scoped, tag = 'scoped memory for tpu_custom_call.1']
    #allocation7 [shape = 'u8[32768]{0}', space=vmem, size = 0x8000, scoped, tag = 'input window, operand 5, single buffered']
    #allocation8 [shape = 'u8[8192]{0}', space=vmem, size = 0x2000, scoped, tag = 'output window, operand 0, single buffered']
    #allocation9 [shape = 'u8[4096]{0}', space=vmem, size = 0x1000, scoped, tag = 'output window, operand 1, single buffered']
    #allocation10 [shape = 's32[1]{0}', space=sflag, size = 0x4, scoped, tag = 'scoped memory for tpu_custom_call.1']
    %14 = vsyncpa [#allocation3], 0
    %15 = vsyncpa [#allocation6], 0
    %16 = vsyncpa [#allocation4], 0
    %17 = vsyncpa [#allocation10], 0
    // Predicated region
    $region2: #{tpu_custom_call.1} parent=1 // pred_check
      _
    $region3: #{tpu_custom_call.1} parent=1 // pred_check_branch
      %19 = sbr.rel (0) target = $region5
    $region4: #{tpu_custom_call.1} parent=1 // pred_region
      %s21 = ssub.s32 128, 128
      %22 = vsyncadd [#allocation3], %s21
      %s23 = sshll.u32 [#allocation2], 4
      %s24 = int_to_ptr.vmem [resolvable:$true] %s23
      %29 = dma.hbm_to_vmem [thread:$0]  %s0, 128, %s24, [#allocation3], 64, 64, 4
    $region5: #{tpu_custom_call.1} parent=1 // pred_fallthru
      _
    // Predicated region
    $region6: #{tpu_custom_call.1} parent=1 // pred_check
      _
    $region7: #{tpu_custom_call.1} parent=1 // pred_check_branch
      %31 = sbr.rel (0) target = $region9
    $region8: #{tpu_custom_call.1} parent=1 // pred_region
      %s33 = ssub.s32 1024, 1024
      %34 = vsyncadd [#allocation6], %s33
      %s35 = sshll.u32 [#allocation5], 4
      %s36 = int_to_ptr.vmem [resolvable:$true] %s35
      %41 = dma.hbm_to_vmem [thread:$0]  %s1, 1024, %s36, [#allocation6], 64, 64, 4
    $region9: #{tpu_custom_call.1} parent=1 // pred_fallthru
      _
    // Predicated region
    $region10: #{tpu_custom_call.1} parent=1 // pred_check
      _
    $region11: #{tpu_custom_call.1} parent=1 // pred_check_branch
      %43 = sbr.rel (0) target = $region13
    $region12: #{tpu_custom_call.1} parent=1 // pred_region
      _
    $region13: #{tpu_custom_call.1} parent=1 // pred_fallthru
      _
    // Predicated region
    $region14: #{tpu_custom_call.1} parent=1 // pred_check
      _
    $region15: #{tpu_custom_call.1} parent=1 // pred_check_branch
      %45 = sbr.rel (0) target = $region17
    $region16: #{tpu_custom_call.1} parent=1 // pred_region
      _
    $region17: #{tpu_custom_call.1} parent=1 // pred_fallthru
      _
    // Predicated region
    $region18: #{tpu_custom_call.1} parent=1 // pred_check
      _
    $region19: #{tpu_custom_call.1} parent=1 // pred_check_branch
      %47 = sbr.rel (0) target = $region21
    $region20: #{tpu_custom_call.1} parent=1 // pred_region
      _
    $region21: #{tpu_custom_call.1} parent=1 // pred_fallthru
      _
    // Predicated region
    $region22: #{tpu_custom_call.1} parent=1 // pred_check
      _
    $region23: #{tpu_custom_call.1} parent=1 // pred_check_branch
      %49 = sbr.rel (0) target = $region25
    $region24: #{tpu_custom_call.1} parent=1 // pred_region
      %s51 = ssub.s32 1024, 1024
      %52 = vsyncadd [#allocation6], %s51
      %s53 = sshll.u32 [#allocation7], 4
      %s54 = int_to_ptr.vmem [resolvable:$true] %s53
      %59 = dma.hbm_to_vmem [thread:$0]  %s5, 1024, %s54, [#allocation6], 64, 64, 4
    $region25: #{tpu_custom_call.1} parent=1 // pred_fallthru
      _
    // Predicated region
    $region26: #{tpu_custom_call.1} parent=1 // pred_check
      _
    $region27: #{tpu_custom_call.1} parent=1 // pred_check_branch
      %61 = sbr.rel (0) target = $region29
    $region28: #{tpu_custom_call.1} parent=1 // pred_region
      _
    $region29: #{tpu_custom_call.1} parent=1 // pred_fallthru
      _
    // Predicated region
    $region30: #{tpu_custom_call.1} parent=1 // pred_check
      _
    $region31: #{tpu_custom_call.1} parent=1 // pred_check_branch
      %63 = sbr.rel (0) target = $region33
    $region32: #{tpu_custom_call.1} parent=1 // pred_region
      %64 = dma.done [#allocation3], 128
    $region33: #{tpu_custom_call.1} parent=1 // pred_fallthru
      _
    // Predicated region
    $region34: #{tpu_custom_call.1} parent=1 // pred_check
      _
    $region35: #{tpu_custom_call.1} parent=1 // pred_check_branch
      %66 = sbr.rel (0) target = $region37
    $region36: #{tpu_custom_call.1} parent=1 // pred_region
      %67 = dma.done [#allocation6], 1024
    $region37: #{tpu_custom_call.1} parent=1 // pred_fallthru
      _
    // Predicated region
    $region38: #{tpu_custom_call.1} parent=1 // pred_check
      _
    $region39: #{tpu_custom_call.1} parent=1 // pred_check_branch
      %69 = sbr.rel (0) target = $region41
    $region40: #{tpu_custom_call.1} parent=1 // pred_region
      %70 = dma.done [#allocation6], 1024
    $region41: #{tpu_custom_call.1} parent=1 // pred_fallthru
      _
    %v72 = vld [vmem:[#allocation2] sm:$0xf]
    %v73 = vld [vmem:[#allocation2 + $0x4] sm:$0xf]
    %v74 = vld [vmem:[#allocation5] sm:$0xf]
    %v75 = vld [vmem:[#allocation5 + $0x4] sm:$0xf]
    %v76 = vld [vmem:[#allocation5 + $0x8] sm:$0xf]
    %v77 = vld [vmem:[#allocation5 + $0xc] sm:$0xf]
    %v78 = vld [vmem:[#allocation5 + $0x10] sm:$0xf]
    %v79 = vld [vmem:[#allocation5 + $0x14] sm:$0xf]
    %v80 = vld [vmem:[#allocation5 + $0x18] sm:$0xf]
    %v81 = vld [vmem:[#allocation5 + $0x1c] sm:$0xf]
    %v82 = vld [vmem:[#allocation5 + $0x20] sm:$0xf]
    %v83 = vld [vmem:[#allocation5 + $0x24] sm:$0xf]
    %v84 = vld [vmem:[#allocation5 + $0x28] sm:$0xf]
    %v85 = vld [vmem:[#allocation5 + $0x2c] sm:$0xf]
    %v86 = vld [vmem:[#allocation5 + $0x30] sm:$0xf]
    %v87 = vld [vmem:[#allocation5 + $0x34] sm:$0xf]
    %v88 = vld [vmem:[#allocation5 + $0x38] sm:$0xf]
    %v89 = vld [vmem:[#allocation5 + $0x3c] sm:$0xf]
    %v90 = vld [vmem:[%s2] sm:$0x1]
    %v92 = vlaneseq
    %v93 = vshrl.u32 %v92, 7
    %v94 = vsub.s32 0, %v93
    %v95 = vrot.slane %v90, %v94
    %v99 = vunpack.c.l.b16 %v72
    %v100 = vunpack.c.l.b16 %v73
    %v101 = vpack.c.b16 %v100, %v99
    %v119 = vunpack.c.l.b16 %v74
    %v120 = vunpack.c.l.b16 %v75
    %v121 = vunpack.c.l.b16 %v76
    %v122 = vunpack.c.l.b16 %v77
    %v123 = vunpack.c.l.b16 %v78
    %v124 = vunpack.c.l.b16 %v79
    %v125 = vunpack.c.l.b16 %v80
    %v126 = vunpack.c.l.b16 %v81
    %v127 = vunpack.c.l.b16 %v82
    %v128 = vunpack.c.l.b16 %v83
    %v129 = vunpack.c.l.b16 %v84
    %v130 = vunpack.c.l.b16 %v85
    %v131 = vunpack.c.l.b16 %v86
    %v132 = vunpack.c.l.b16 %v87
    %v133 = vunpack.c.l.b16 %v88
    %v134 = vunpack.c.l.b16 %v89
    %v135 = vpack.c.b16 %v120, %v119
    %v136 = vpack.c.b16 %v122, %v121
    %v137 = vpack.c.b16 %v124, %v123
    %v138 = vpack.c.b16 %v126, %v125
    %v139 = vpack.c.b16 %v128, %v127
    %v140 = vpack.c.b16 %v130, %v129
    %v141 = vpack.c.b16 %v132, %v131
    %v142 = vpack.c.b16 %v134, %v133
    %151 = vmatprep.subr.bf16.mxu0 0
    %152 = vmatpush1.bf16.msra.mxu0 %v135
    %153 = vmatprep.subr.bf16.mxu0 0
    %154 = vmatpush1.bf16.msra.mxu0 %v136
    %155 = vmatprep.subr.bf16.mxu0 0
    %156 = vmatpush1.bf16.msra.mxu0 %v137
    %157 = vmatprep.subr.bf16.mxu0 0
    %158 = vmatpush1.bf16.msra.mxu0 %v138
    %159 = vmatprep.subr.bf16.mxu0 0
    %160 = vmatpush1.bf16.msra.mxu0 %v139
    %161 = vmatprep.subr.bf16.mxu0 0
    %162 = vmatpush1.bf16.msra.mxu0 %v140
    %163 = vmatprep.subr.bf16.mxu0 0
    %164 = vmatpush1.bf16.msra.mxu0 %v141
    %165 = vmatprep.subr.bf16.mxu0 0
    %166 = vmatpush1.bf16.msra.mxu0 %v142
    %167 = vmatprep.subr.bf16.mxu0 0
    %168 = vmatpush1.bf16.msra.mxu0 0
    %169 = vmatprep.subr.bf16.mxu0 0
    %170 = vmatpush1.bf16.msra.mxu0 0
    %171 = vmatprep.subr.bf16.mxu0 0
    %172 = vmatpush1.bf16.msra.mxu0 0
    %173 = vmatprep.subr.bf16.mxu0 0
    %174 = vmatpush1.bf16.msra.mxu0 0
    %175 = vmatprep.subr.bf16.mxu0 0
    %176 = vmatpush1.bf16.msra.mxu0 0
    %177 = vmatprep.subr.bf16.mxu0 0
    %178 = vmatpush1.bf16.msra.mxu0 0
    %179 = vmatprep.subr.bf16.mxu0 0
    %180 = vmatpush1.bf16.msra.mxu0 0
    %181 = vmatprep.subr.bf16.mxu0 0
    %182 = vmatpush1.bf16.msra.mxu0 0
    %183 = vmatprep.mubr.bf16.mxu0 0
    %184 = vmatmul.mubr.bf16.gmra.mrb[0].mxu0 %v101
    %v185 = vpop.f32.mrb[0].mxu0
    %v186 = vadd.f32 %v95, %v185
    %v187 = vpop.f32.mrb[0].mxu0
    %v188 = vpop.f32.mrb[0].mxu0
    %v189 = vadd.f32 %v95, %v188
    %v190 = vpop.f32.mrb[0].mxu0
    %191 = vdwg.mxu0
    %v192 = vmax.f32 %v186, 0.0
    %v193 = vmax.f32 %v189, 0.0
    %v194 = vpack.c.bf16 %v193, %v192
    %v195 = vld [vmem:[#allocation7] sm:$0xf]
    %v196 = vld [vmem:[#allocation7 + $0x4] sm:$0xf]
    %v197 = vld [vmem:[#allocation7 + $0x8] sm:$0xf]
    %v198 = vld [vmem:[#allocation7 + $0xc] sm:$0xf]
    %v199 = vld [vmem:[#allocation7 + $0x10] sm:$0xf]
    %v200 = vld [vmem:[#allocation7 + $0x14] sm:$0xf]
    %v201 = vld [vmem:[#allocation7 + $0x18] sm:$0xf]
    %v202 = vld [vmem:[#allocation7 + $0x1c] sm:$0xf]
    %v203 = vld [vmem:[#allocation7 + $0x20] sm:$0xf]
    %v204 = vld [vmem:[#allocation7 + $0x24] sm:$0xf]
    %v205 = vld [vmem:[#allocation7 + $0x28] sm:$0xf]
    %v206 = vld [vmem:[#allocation7 + $0x2c] sm:$0xf]
    %v207 = vld [vmem:[#allocation7 + $0x30] sm:$0xf]
    %v208 = vld [vmem:[#allocation7 + $0x34] sm:$0xf]
    %v209 = vld [vmem:[#allocation7 + $0x38] sm:$0xf]
    %v210 = vld [vmem:[#allocation7 + $0x3c] sm:$0xf]
    %v211 = vld [vmem:[%s6] sm:$0x1]
    %v213 = vlaneseq
    %v214 = vshrl.u32 %v213, 7
    %v215 = vsub.s32 0, %v214
    %v216 = vrot.slane %v211, %v215
    %v234 = vunpack.c.l.b16 %v195
    %v235 = vunpack.c.l.b16 %v196
    %v236 = vunpack.c.l.b16 %v197
    %v237 = vunpack.c.l.b16 %v198
    %v238 = vunpack.c.l.b16 %v199
    %v239 = vunpack.c.l.b16 %v200
    %v240 = vunpack.c.l.b16 %v201
    %v241 = vunpack.c.l.b16 %v202
    %v242 = vunpack.c.l.b16 %v203
    %v243 = vunpack.c.l.b16 %v204
    %v244 = vunpack.c.l.b16 %v205
    %v245 = vunpack.c.l.b16 %v206
    %v246 = vunpack.c.l.b16 %v207
    %v247 = vunpack.c.l.b16 %v208
    %v248 = vunpack.c.l.b16 %v209
    %v249 = vunpack.c.l.b16 %v210
    %v250 = vpack.c.b16 %v235, %v234
    %v251 = vpack.c.b16 %v237, %v236
    %v252 = vpack.c.b16 %v239, %v238
    %v253 = vpack.c.b16 %v241, %v240
    %v254 = vpack.c.b16 %v243, %v242
    %v255 = vpack.c.b16 %v245, %v244
    %v256 = vpack.c.b16 %v247, %v246
    %v257 = vpack.c.b16 %v249, %v248
    %266 = vmatprep.subr.bf16.mxu0 0
    %267 = vmatpush1.bf16.msra.mxu0 %v250
    %268 = vmatprep.subr.bf16.mxu0 0
    %269 = vmatpush1.bf16.msra.mxu0 %v251
    %270 = vmatprep.subr.bf16.mxu0 0
    %271 = vmatpush1.bf16.msra.mxu0 %v252
    %272 = vmatprep.subr.bf16.mxu0 0
    %273 = vmatpush1.bf16.msra.mxu0 %v253
    %274 = vmatprep.subr.bf16.mxu0 0
    %275 = vmatpush1.bf16.msra.mxu0 %v254
    %276 = vmatprep.subr.bf16.mxu0 0
    %277 = vmatpush1.bf16.msra.mxu0 %v255
    %278 = vmatprep.subr.bf16.mxu0 0
    %279 = vmatpush1.bf16.msra.mxu0 %v256
    %280 = vmatprep.subr.bf16.mxu0 0
    %281 = vmatpush1.bf16.msra.mxu0 %v257
    %282 = vmatprep.subr.bf16.mxu0 0
    %283 = vmatpush1.bf16.msra.mxu0 0
    %284 = vmatprep.subr.bf16.mxu0 0
    %285 = vmatpush1.bf16.msra.mxu0 0
    %286 = vmatprep.subr.bf16.mxu0 0
    %287 = vmatpush1.bf16.msra.mxu0 0
    %288 = vmatprep.subr.bf16.mxu0 0
    %289 = vmatpush1.bf16.msra.mxu0 0
    %290 = vmatprep.subr.bf16.mxu0 0
    %291 = vmatpush1.bf16.msra.mxu0 0
    %292 = vmatprep.subr.bf16.mxu0 0
    %293 = vmatpush1.bf16.msra.mxu0 0
    %294 = vmatprep.subr.bf16.mxu0 0
    %295 = vmatpush1.bf16.msra.mxu0 0
    %296 = vmatprep.subr.bf16.mxu0 0
    %297 = vmatpush1.bf16.msra.mxu0 0
    %298 = vmatprep.mubr.bf16.mxu0 0
    %299 = vmatmul.mubr.bf16.gmra.mrb[0].mxu0 %v194
    %v300 = vpop.f32.mrb[0].mxu0
    %v301 = vadd.f32 %v216, %v300
    %v302 = vpop.f32.mrb[0].mxu0
    %v303 = vpop.f32.mrb[0].mxu0
    %v304 = vadd.f32 %v216, %v303
    %v305 = vpop.f32.mrb[0].mxu0
    %306 = vdwg.mxu0
    %307 = vst [vmem:[#allocation8] sm:$0xff] %v301
    %308 = vst [vmem:[#allocation8 + $0x8] sm:$0xff] %v304
    %v309 = vld [vmem:[%s3] sm:$0x1]
    %v311 = vlaneseq
    %v312 = vshrl.u32 %v311, 7
    %v313 = vsub.s32 0, %v312
    %v314 = vrot.slane %v309, %v313
    %v316 = vmul.f32 %v192, %v314
    %v317 = vmul.f32 %v193, %v314
    %v318 = vld [vmem:[%s4] sm:$0x1]
    %v320 = vlaneseq
    %v321 = vshrl.u32 %v320, 7
    %v322 = vsub.s32 0, %v321
    %v323 = vrot.slane %v318, %v322
    %v325 = vadd.f32 %v316, %v323
    %v326 = vadd.f32 %v317, %v323
    %v327 = vpack.c.bf16 %v326, %v325
    %v329 = vunpack.c.l.b16 %v327
    %v330 = vunpack.c.h.b16 %v327
    %v331 = vpack.c.b16 %v329, %v329
    %v332 = vpack.c.b16 %v330, %v330
    %335 = vst [vmem:[#allocation9] sm:$0xf] %v331
    %336 = vst [vmem:[#allocation9 + $0x4] sm:$0xf] %v332
    // Predicated region
    $region42: #{tpu_custom_call.1} parent=1 // pred_check
      _
    $region43: #{tpu_custom_call.1} parent=1 // pred_check_branch
      %338 = sbr.rel (0) target = $region45
    $region44: #{tpu_custom_call.1} parent=1 // pred_region
      %s340 = ssub.s32 256, 256
      %341 = vsyncadd [#allocation4], %s340
      %s342 = sshll.u32 [#allocation8], 4
      %s343 = int_to_ptr.vmem [resolvable:$true] %s342
      %348 = dma.vmem_to_hbm [thread:$0]  %s343, 256, %s7, [#allocation4], 128, 128, 8
    $region45: #{tpu_custom_call.1} parent=1 // pred_fallthru
      _
    // Predicated region
    $region46: #{tpu_custom_call.1} parent=1 // pred_check
      _
    $region47: #{tpu_custom_call.1} parent=1 // pred_check_branch
      %350 = sbr.rel (0) target = $region49
    $region48: #{tpu_custom_call.1} parent=1 // pred_region
      %s352 = ssub.s32 128, 128
      %353 = vsyncadd [#allocation10], %s352
      %s354 = sshll.u32 [#allocation9], 4
      %s355 = int_to_ptr.vmem [resolvable:$true] %s354
      %360 = dma.vmem_to_hbm [thread:$0]  %s355, 128, %s8, [#allocation10], 64, 64, 4
    $region49: #{tpu_custom_call.1} parent=1 // pred_fallthru
      _
    // Predicated region
    $region50: #{tpu_custom_call.1} parent=1 // pred_check
      _
    $region51: #{tpu_custom_call.1} parent=1 // pred_check_branch
      %362 = sbr.rel (0) target = $region53
    $region52: #{tpu_custom_call.1} parent=1 // pred_region
      %363 = dma.done [#allocation4], 256
    $region53: #{tpu_custom_call.1} parent=1 // pred_fallthru
      _
    // Predicated region
    $region54: #{tpu_custom_call.1} parent=1 // pred_check
      _
    $region55: #{tpu_custom_call.1} parent=1 // pred_check_branch
      %365 = sbr.rel (0) target = $region57
    $region56: #{tpu_custom_call.1} parent=1 // pred_region
      %366 = dma.done [#allocation10], 128
    $region57: #{tpu_custom_call.1} parent=1 // pred_fallthru
      _
    %367 = vsyncpa [#allocation3], 1
    %368 = vsyncpa [#allocation6], 1
    %369 = vsyncpa [#allocation4], 1
    %370 = vsyncpa [#allocation10], 1

// kernel: tpu_custom_call.1
$region0: #{tpu_custom_call.1}
  #allocation0 [shape = 'u32[]', space=smem, size = 0x4, offset = 0x4, fixed_abs, tag = 'smem constant byte address 0x4 - core index']
  #allocation1 [shape = 'u32[144,128]{1,0:T(1,128)}', space=vmem, size = 0x12000, scoped, tag = 'internal scratch']
  %s0 = inlined_call_operand.hbm [shape: bf16[16,128], index: 0, kind: input, shape index: {}]
  %s1 = inlined_call_operand.hbm [shape: bf16[128,128], index: 1, kind: input, shape index: {}]
  %s2 = inlined_call_operand.vmem [shape: f32[1,128], index: 2, kind: input, shape index: {}]
  %s3 = inlined_call_operand.vmem [shape: f32[1,128], index: 3, kind: input, shape index: {}]
  %s4 = inlined_call_operand.vmem [shape: f32[1,128], index: 4, kind: input, shape index: {}]
  %s5 = inlined_call_operand.hbm [shape: bf16[128,128], index: 5, kind: input, shape index: {}]
  %s6 = inlined_call_operand.vmem [shape: f32[1,128], index: 6, kind: input, shape index: {}]
  %s7 = inlined_call_operand.hbm [shape: f32[16,128], index: 7, kind: output, shape index: {0}]
  %s8 = inlined_call_operand.hbm [shape: bf16[16,128], index: 8, kind: output, shape index: {1}]
  %9 = xla_tuple %s7, %s8
  %s10 = sld [smem:[#allocation0]]
  $region58: #{tpu_custom_call.1} parent=0
    _
  %s12 = ssub.s32 1, %s10
  %s13 = scalar_select 0, %s12, %s10
  $region1: #{tpu_custom_call.1} parent=0
    #allocation2 [shape = 'u8[4096]{0}', space=vmem, size = 0x1000, scoped, tag = 'input window, operand 0, single buffered']
    #allocation3 [shape = 's32[1]{0}', space=sflag, size = 0x4, scoped, tag = 'scoped memory for tpu_custom_call.1']
    #allocation4 [shape = 's32[1]{0}', space=sflag, size = 0x4, scoped, tag = 'scoped memory for tpu_custom_call.1']
    #allocation5 [shape = 'u8[32768]{0}', space=vmem, size = 0x8000, scoped, tag = 'input window, operand 1, single buffered']
    #allocation6 [shape = 's32[1]{0}', space=sflag, size = 0x4, scoped, tag = 'scoped memory for tpu_custom_call.1']
    #allocation7 [shape = 'u8[32768]{0}', space=vmem, size = 0x8000, scoped, tag = 'input window, operand 5, single buffered']
    #allocation8 [shape = 'u8[8192]{0}', space=vmem, size = 0x2000, scoped, tag = 'output window, operand 0, single buffered']
    #allocation9 [shape = 'u8[4096]{0}', space=vmem, size = 0x1000, scoped, tag = 'output window, operand 1, single buffered']
    #allocation10 [shape = 's32[1]{0}', space=sflag, size = 0x4, scoped, tag = 'scoped memory for tpu_custom_call.1']
    %14 = vsyncpa [#allocation3], 0
    %15 = vsyncpa [#allocation6], 0
    %16 = vsyncpa [#allocation4], 0
    %17 = vsyncpa [#allocation10], 0
    // Predicated region
    $region2: #{tpu_custom_call.1} parent=1 // pred_check
      _
    $region3: #{tpu_custom_call.1} parent=1 // pred_check_branch
      %19 = sbr.rel (0) target = $region5
    $region4: #{tpu_custom_call.1} parent=1 // pred_region
      %s21 = ssub.s32 128, 128
      %22 = vsyncadd [#allocation3], %s21
      %s23 = sshll.u32 [#allocation2], 4
      %s24 = int_to_ptr.vmem [resolvable:$true] %s23
      %29 = dma.hbm_to_vmem [thread:$0]  %s0, 128, %s24, [#allocation3], 64, 64, 4
    $region5: #{tpu_custom_call.1} parent=1 // pred_fallthru
      _
    // Predicated region
    $region6: #{tpu_custom_call.1} parent=1 // pred_check
      _
    $region7: #{tpu_custom_call.1} parent=1 // pred_check_branch
      %31 = sbr.rel (0) target = $region9
    $region8: #{tpu_custom_call.1} parent=1 // pred_region
      %s33 = ssub.s32 1024, 1024
      %34 = vsyncadd [#allocation6], %s33
      %s35 = sshll.u32 [#allocation5], 4
      %s36 = int_to_ptr.vmem [resolvable:$true] %s35
      %41 = dma.hbm_to_vmem [thread:$0]  %s1, 1024, %s36, [#allocation6], 64, 64, 4
    $region9: #{tpu_custom_call.1} parent=1 // pred_fallthru
      _
    // Predicated region
    $region10: #{tpu_custom_call.1} parent=1 // pred_check
      _
    $region11: #{tpu_custom_call.1} parent=1 // pred_check_branch
      %43 = sbr.rel (0) target = $region13
    $region12: #{tpu_custom_call.1} parent=1 // pred_region
      _
    $region13: #{tpu_custom_call.1} parent=1 // pred_fallthru
      _
    // Predicated region
    $region14: #{tpu_custom_call.1} parent=1 // pred_check
      _
    $region15: #{tpu_custom_call.1} parent=1 // pred_check_branch
      %45 = sbr.rel (0) target = $region17
    $region16: #{tpu_custom_call.1} parent=1 // pred_region
      _
    $region17: #{tpu_custom_call.1} parent=1 // pred_fallthru
      _
    // Predicated region
    $region18: #{tpu_custom_call.1} parent=1 // pred_check
      _
    $region19: #{tpu_custom_call.1} parent=1 // pred_check_branch
      %47 = sbr.rel (0) target = $region21
    $region20: #{tpu_custom_call.1} parent=1 // pred_region
      _
    $region21: #{tpu_custom_call.1} parent=1 // pred_fallthru
      _
    // Predicated region
    $region22: #{tpu_custom_call.1} parent=1 // pred_check
      _
    $region23: #{tpu_custom_call.1} parent=1 // pred_check_branch
      %49 = sbr.rel (0) target = $region25
    $region24: #{tpu_custom_call.1} parent=1 // pred_region
      %s51 = ssub.s32 1024, 1024
      %52 = vsyncadd [#allocation6], %s51
      %s53 = sshll.u32 [#allocation7], 4
      %s54 = int_to_ptr.vmem [resolvable:$true] %s53
      %59 = dma.hbm_to_vmem [thread:$0]  %s5, 1024, %s54, [#allocation6], 64, 64, 4
    $region25: #{tpu_custom_call.1} parent=1 // pred_fallthru
      _
    // Predicated region
    $region26: #{tpu_custom_call.1} parent=1 // pred_check
      _
    $region27: #{tpu_custom_call.1} parent=1 // pred_check_branch
      %61 = sbr.rel (0) target = $region29
    $region28: #{tpu_custom_call.1} parent=1 // pred_region
      _
    $region29: #{tpu_custom_call.1} parent=1 // pred_fallthru
      _
    // Predicated region
    $region30: #{tpu_custom_call.1} parent=1 // pred_check
      _
    $region31: #{tpu_custom_call.1} parent=1 // pred_check_branch
      %63 = sbr.rel (0) target = $region33
    $region32: #{tpu_custom_call.1} parent=1 // pred_region
      %64 = dma.done [#allocation3], 128
    $region33: #{tpu_custom_call.1} parent=1 // pred_fallthru
      _
    // Predicated region
    $region34: #{tpu_custom_call.1} parent=1 // pred_check
      _
    $region35: #{tpu_custom_call.1} parent=1 // pred_check_branch
      %66 = sbr.rel (0) target = $region37
    $region36: #{tpu_custom_call.1} parent=1 // pred_region
      %67 = dma.done [#allocation6], 1024
    $region37: #{tpu_custom_call.1} parent=1 // pred_fallthru
      _
    // Predicated region
    $region38: #{tpu_custom_call.1} parent=1 // pred_check
      _
    $region39: #{tpu_custom_call.1} parent=1 // pred_check_branch
      %69 = sbr.rel (0) target = $region41
    $region40: #{tpu_custom_call.1} parent=1 // pred_region
      %70 = dma.done [#allocation6], 1024
    $region41: #{tpu_custom_call.1} parent=1 // pred_fallthru
      _
    %v72 = vld [vmem:[#allocation2] sm:$0xf]
    %v73 = vld [vmem:[#allocation2 + $0x4] sm:$0xf]
    %v74 = vld [vmem:[#allocation5] sm:$0xf]
    %v75 = vld [vmem:[#allocation5 + $0x4] sm:$0xf]
    %v76 = vld [vmem:[#allocation5 + $0x8] sm:$0xf]
    %v77 = vld [vmem:[#allocation5 + $0xc] sm:$0xf]
    %v78 = vld [vmem:[#allocation5 + $0x10] sm:$0xf]
    %v79 = vld [vmem:[#allocation5 + $0x14] sm:$0xf]
    %v80 = vld [vmem:[#allocation5 + $0x18] sm:$0xf]
    %v81 = vld [vmem:[#allocation5 + $0x1c] sm:$0xf]
    %v82 = vld [vmem:[#allocation5 + $0x20] sm:$0xf]
    %v83 = vld [vmem:[#allocation5 + $0x24] sm:$0xf]
    %v84 = vld [vmem:[#allocation5 + $0x28] sm:$0xf]
    %v85 = vld [vmem:[#allocation5 + $0x2c] sm:$0xf]
    %v86 = vld [vmem:[#allocation5 + $0x30] sm:$0xf]
    %v87 = vld [vmem:[#allocation5 + $0x34] sm:$0xf]
    %v88 = vld [vmem:[#allocation5 + $0x38] sm:$0xf]
    %v89 = vld [vmem:[#allocation5 + $0x3c] sm:$0xf]
    %v90 = vld [vmem:[%s2] sm:$0x1]
    %v92 = vlaneseq
    %v93 = vshrl.u32 %v92, 7
    %v94 = vsub.s32 0, %v93
    %v95 = vrot.slane %v90, %v94
    %v99 = vunpack.c.l.b16 %v72
    %v100 = vunpack.c.l.b16 %v73
    %v101 = vpack.c.b16 %v100, %v99
    %v119 = vunpack.c.l.b16 %v74
    %v120 = vunpack.c.l.b16 %v75
    %v121 = vunpack.c.l.b16 %v76
    %v122 = vunpack.c.l.b16 %v77
    %v123 = vunpack.c.l.b16 %v78
    %v124 = vunpack.c.l.b16 %v79
    %v125 = vunpack.c.l.b16 %v80
    %v126 = vunpack.c.l.b16 %v81
    %v127 = vunpack.c.l.b16 %v82
    %v128 = vunpack.c.l.b16 %v83
    %v129 = vunpack.c.l.b16 %v84
    %v130 = vunpack.c.l.b16 %v85
    %v131 = vunpack.c.l.b16 %v86
    %v132 = vunpack.c.l.b16 %v87
    %v133 = vunpack.c.l.b16 %v88
    %v134 = vunpack.c.l.b16 %v89
    %v135 = vpack.c.b16 %v120, %v119
    %v136 = vpack.c.b16 %v122, %v121
    %v137 = vpack.c.b16 %v124, %v123
    %v138 = vpack.c.b16 %v126, %v125
    %v139 = vpack.c.b16 %v128, %v127
    %v140 = vpack.c.b16 %v130, %v129
    %v141 = vpack.c.b16 %v132, %v131
    %v142 = vpack.c.b16 %v134, %v133
    %151 = vmatprep.subr.bf16.mxu0 0
    %152 = vmatpush1.bf16.msra.mxu0 %v135
    %153 = vmatprep.subr.bf16.mxu0 0
    %154 = vmatpush1.bf16.msra.mxu0 %v136
    %155 = vmatprep.subr.bf16.mxu0 0
    %156 = vmatpush1.bf16.msra.mxu0 %v137
    %157 = vmatprep.subr.bf16.mxu0 0
    %158 = vmatpush1.bf16.msra.mxu0 %v138
    %159 = vmatprep.subr.bf16.mxu0 0
    %160 = vmatpush1.bf16.msra.mxu0 %v139
    %161 = vmatprep.subr.bf16.mxu0 0
    %162 = vmatpush1.bf16.msra.mxu0 %v140
    %163 = vmatprep.subr.bf16.mxu0 0
    %164 = vmatpush1.bf16.msra.mxu0 %v141
    %165 = vmatprep.subr.bf16.mxu0 0
    %166 = vmatpush1.bf16.msra.mxu0 %v142
    %167 = vmatprep.subr.bf16.mxu0 0
    %168 = vmatpush1.bf16.msra.mxu0 0
    %169 = vmatprep.subr.bf16.mxu0 0
    %170 = vmatpush1.bf16.msra.mxu0 0
    %171 = vmatprep.subr.bf16.mxu0 0
    %172 = vmatpush1.bf16.msra.mxu0 0
    %173 = vmatprep.subr.bf16.mxu0 0
    %174 = vmatpush1.bf16.msra.mxu0 0
    %175 = vmatprep.subr.bf16.mxu0 0
    %176 = vmatpush1.bf16.msra.mxu0 0
    %177 = vmatprep.subr.bf16.mxu0 0
    %178 = vmatpush1.bf16.msra.mxu0 0
    %179 = vmatprep.subr.bf16.mxu0 0
    %180 = vmatpush1.bf16.msra.mxu0 0
    %181 = vmatprep.subr.bf16.mxu0 0
    %182 = vmatpush1.bf16.msra.mxu0 0
    %183 = vmatprep.mubr.bf16.mxu0 0
    %184 = vmatmul.mubr.bf16.gmra.mrb[0].mxu0 %v101
    %v185 = vpop.f32.mrb[0].mxu0
    %v186 = vadd.f32 %v95, %v185
    %v187 = vpop.f32.mrb[0].mxu0
    %v188 = vpop.f32.mrb[0].mxu0
    %v189 = vadd.f32 %v95, %v188
    %v190 = vpop.f32.mrb[0].mxu0
    %191 = vdwg.mxu0
    %v192 = vmax.f32 %v186, 0.0
    %v193 = vmax.f32 %v189, 0.0
    %v194 = vpack.c.bf16 %v193, %v192
    %v195 = vld [vmem:[#allocation7] sm:$0xf]
    %v196 = vld [vmem:[#allocation7 + $0x4] sm:$0xf]
    %v197 = vld [vmem:[#allocation7 + $0x8] sm:$0xf]
    %v198 = vld [vmem:[#allocation7 + $0xc] sm:$0xf]
    %v199 = vld [vmem:[#allocation7 + $0x10] sm:$0xf]
    %v200 = vld [vmem:[#allocation7 + $0x14] sm:$0xf]
    %v201 = vld [vmem:[#allocation7 + $0x18] sm:$0xf]
    %v202 = vld [vmem:[#allocation7 + $0x1c] sm:$0xf]
    %v203 = vld [vmem:[#allocation7 + $0x20] sm:$0xf]
    %v204 = vld [vmem:[#allocation7 + $0x24] sm:$0xf]
    %v205 = vld [vmem:[#allocation7 + $0x28] sm:$0xf]
    %v206 = vld [vmem:[#allocation7 + $0x2c] sm:$0xf]
    %v207 = vld [vmem:[#allocation7 + $0x30] sm:$0xf]
    %v208 = vld [vmem:[#allocation7 + $0x34] sm:$0xf]
    %v209 = vld [vmem:[#allocation7 + $0x38] sm:$0xf]
    %v210 = vld [vmem:[#allocation7 + $0x3c] sm:$0xf]
    %v211 = vld [vmem:[%s6] sm:$0x1]
    %v213 = vlaneseq
    %v214 = vshrl.u32 %v213, 7
    %v215 = vsub.s32 0, %v214
    %v216 = vrot.slane %v211, %v215
    %v234 = vunpack.c.l.b16 %v195
    %v235 = vunpack.c.l.b16 %v196
    %v236 = vunpack.c.l.b16 %v197
    %v237 = vunpack.c.l.b16 %v198
    %v238 = vunpack.c.l.b16 %v199
    %v239 = vunpack.c.l.b16 %v200
    %v240 = vunpack.c.l.b16 %v201
    %v241 = vunpack.c.l.b16 %v202
    %v242 = vunpack.c.l.b16 %v203
    %v243 = vunpack.c.l.b16 %v204
    %v244 = vunpack.c.l.b16 %v205
    %v245 = vunpack.c.l.b16 %v206
    %v246 = vunpack.c.l.b16 %v207
    %v247 = vunpack.c.l.b16 %v208
    %v248 = vunpack.c.l.b16 %v209
    %v249 = vunpack.c.l.b16 %v210
    %v250 = vpack.c.b16 %v235, %v234
    %v251 = vpack.c.b16 %v237, %v236
    %v252 = vpack.c.b16 %v239, %v238
    %v253 = vpack.c.b16 %v241, %v240
    %v254 = vpack.c.b16 %v243, %v242
    %v255 = vpack.c.b16 %v245, %v244
    %v256 = vpack.c.b16 %v247, %v246
    %v257 = vpack.c.b16 %v249, %v248
    %266 = vmatprep.subr.bf16.mxu0 0
    %267 = vmatpush1.bf16.msra.mxu0 %v250
    %268 = vmatprep.subr.bf16.mxu0 0
    %269 = vmatpush1.bf16.msra.mxu0 %v251
    %270 = vmatprep.subr.bf16.mxu0 0
    %271 = vmatpush1.bf16.msra.mxu0 %v252
    %272 = vmatprep.subr.bf16.mxu0 0
    %273 = vmatpush1.bf16.msra.mxu0 %v253
    %274 = vmatprep.subr.bf16.mxu0 0
    %275 = vmatpush1.bf16.msra.mxu0 %v254
    %276 = vmatprep.subr.bf16.mxu0 0
    %277 = vmatpush1.bf16.msra.mxu0 %v255
    %278 = vmatprep.subr.bf16.mxu0 0
    %279 = vmatpush1.bf16.msra.mxu0 %v256
    %280 = vmatprep.subr.bf16.mxu0 0
    %281 = vmatpush1.bf16.msra.mxu0 %v257
    %282 = vmatprep.subr.bf16.mxu0 0
    %283 = vmatpush1.bf16.msra.mxu0 0
    %284 = vmatprep.subr.bf16.mxu0 0
    %285 = vmatpush1.bf16.msra.mxu0 0
    %286 = vmatprep.subr.bf16.mxu0 0
    %287 = vmatpush1.bf16.msra.mxu0 0
    %288 = vmatprep.subr.bf16.mxu0 0
    %289 = vmatpush1.bf16.msra.mxu0 0
    %290 = vmatprep.subr.bf16.mxu0 0
    %291 = vmatpush1.bf16.msra.mxu0 0
    %292 = vmatprep.subr.bf16.mxu0 0
    %293 = vmatpush1.bf16.msra.mxu0 0
    %294 = vmatprep.subr.bf16.mxu0 0
    %295 = vmatpush1.bf16.msra.mxu0 0
    %296 = vmatprep.subr.bf16.mxu0 0
    %297 = vmatpush1.bf16.msra.mxu0 0
    %298 = vmatprep.mubr.bf16.mxu0 0
    %299 = vmatmul.mubr.bf16.gmra.mrb[0].mxu0 %v194
    %v300 = vpop.f32.mrb[0].mxu0
    %v301 = vadd.f32 %v216, %v300
    %v302 = vpop.f32.mrb[0].mxu0
    %v303 = vpop.f32.mrb[0].mxu0
    %v304 = vadd.f32 %v216, %v303
    %v305 = vpop.f32.mrb[0].mxu0
    %306 = vdwg.mxu0
    %307 = vst [vmem:[#allocation8] sm:$0xff] %v301
    %308 = vst [vmem:[#allocation8 + $0x8] sm:$0xff] %v304
    %v309 = vld [vmem:[%s3] sm:$0x1]
    %v311 = vlaneseq
    %v312 = vshrl.u32 %v311, 7
    %v313 = vsub.s32 0, %v312
    %v314 = vrot.slane %v309, %v313
    %v316 = vmul.f32 %v192, %v314
    %v317 = vmul.f32 %v193, %v314
    %v318 = vld [vmem:[%s4] sm:$0x1]
    %v320 = vlaneseq
    %v321 = vshrl.u32 %v320, 7
    %v322 = vsub.s32 0, %v321
    %v323 = vrot.slane %v318, %v322
    %v325 = vadd.f32 %v316, %v323
    %v326 = vadd.f32 %v317, %v323
    %v327 = vpack.c.bf16 %v326, %v325
    %v329 = vunpack.c.l.b16 %v327
    %v330 = vunpack.c.h.b16 %v327
    %v331 = vpack.c.b16 %v329, %v329
    %v332 = vpack.c.b16 %v330, %v330
    %335 = vst [vmem:[#allocation9] sm:$0xf] %v331
    %336 = vst [vmem:[#allocation9 + $0x4] sm:$0xf] %v332
    // Predicated region
    $region42: #{tpu_custom_call.1} parent=1 // pred_check
      _
    $region43: #{tpu_custom_call.1} parent=1 // pred_check_branch
      %338 = sbr.rel (0) target = $region45
    $region44: #{tpu_custom_call.1} parent=1 // pred_region
      %s340 = ssub.s32 256, 256
      %341 = vsyncadd [#allocation4], %s340
      %s342 = sshll.u32 [#allocation8], 4
      %s343 = int_to_ptr.vmem [resolvable:$true] %s342
      %348 = dma.vmem_to_hbm [thread:$0]  %s343, 256, %s7, [#allocation4], 128, 128, 8
    $region45: #{tpu_custom_call.1} parent=1 // pred_fallthru
      _
    // Predicated region
    $region46: #{tpu_custom_call.1} parent=1 // pred_check
      _
    $region47: #{tpu_custom_call.1} parent=1 // pred_check_branch
      %350 = sbr.rel (0) target = $region49
    $region48: #{tpu_custom_call.1} parent=1 // pred_region
      %s352 = ssub.s32 128, 128
      %353 = vsyncadd [#allocation10], %s352
      %s354 = sshll.u32 [#allocation9], 4
      %s355 = int_to_ptr.vmem [resolvable:$true] %s354
      %360 = dma.vmem_to_hbm [thread:$0]  %s355, 128, %s8, [#allocation10], 64, 64, 4
    $region49: #{tpu_custom_call.1} parent=1 // pred_fallthru
      _
    // Predicated region
    $region50: #{tpu_custom_call.1} parent=1 // pred_check
      _
    $region51: #{tpu_custom_call.1} parent=1 // pred_check_branch
      %362 = sbr.rel (0) target = $region53
    $region52: #{tpu_custom_call.1} parent=1 // pred_region
      %363 = dma.done [#allocation4], 256
    $region53: #{tpu_custom_call.1} parent=1 // pred_fallthru
      _
    // Predicated region
    $region54: #{tpu_custom_call.1} parent=1 // pred_check
      _
    $region55: #{tpu_custom_call.1} parent=1 // pred_check_branch
      %365 = sbr.rel (0) target = $region57
    $region56: #{tpu_custom_call.1} parent=1 // pred_region
      %366 = dma.done [#allocation10], 128
    $region57: #{tpu_custom_call.1} parent=1 // pred_fallthru
      _
    %367 = vsyncpa [#allocation3], 1
    %368 = vsyncpa [#allocation6], 1
    %369 = vsyncpa [#allocation4], 1
    %370 = vsyncpa [#allocation10], 1

</llo_original>
